<compile_context>
chip_gen: v5e
topology: v5e:2x2
jax: 0.10.0
libtpu: 0.0.40
codegen_flags: <defaults>
</compile_context>

<pallas_src>
import jax
import jax.numpy as jnp
from jax.experimental import pallas as pl
from jax.experimental.pallas import tpu as pltpu

_LANE = 128


def _round_up(x, m):
    return (x + m - 1) // m * m


def _fused_sage3_kernel(a_ref, x_ref,
                        w1_ref, b1_ref, w2_ref, b2_ref, w3_ref, b3_ref,
                        o_ref, h0_ref, h1_ref):
    """Three fused SAGEConv('mean') layers, everything VMEM-resident.

    a_ref  : [Np, Np]   bf16  row-normalized adjacency (mean aggregator)
    x_ref  : [Np, Fp]   bf16  input node features (zero padded)
    w*_ref : [Fp, 2*Fp] bf16  [W_self | W_neigh] concatenated along lanes
    b*_ref : [1, Fp]    f32   bias (zero padded)
    o_ref  : [Np, Fp]   f32   final layer output
    h0/h1  : [Np, Fp]   bf16  VMEM ping-pong activation scratch
    """
    fp = o_ref.shape[1]
    a = a_ref[...]  # stays resident for all three layers

    def layer(h, w_ref, b_ref, relu):
        # One wide MXU matmul covers both branches: [Np, Fp] @ [Fp, 2*Fp] -> f32 acc.
        hw = jnp.dot(h, w_ref[...], preferred_element_type=jnp.float32)
        h_self = hw[:, :fp]                              # X @ W_self
        h_nb = hw[:, fp:].astype(jnp.bfloat16)           # X @ W_neigh (reassociated)
        # Mean aggregation: A_norm @ (X @ W_neigh) -- N^2 matmul at output width.
        h_agg = jnp.dot(a, h_nb, preferred_element_type=jnp.float32)
        out = h_self + h_agg + b_ref[...]
        if relu:
            out = jnp.maximum(out, 0.0)
        return out

    h0_ref[...] = layer(x_ref[...], w1_ref, b1_ref, relu=True).astype(jnp.bfloat16)
    h1_ref[...] = layer(h0_ref[...], w2_ref, b2_ref, relu=True).astype(jnp.bfloat16)
    o_ref[...] = layer(h1_ref[...], w3_ref, b3_ref, relu=False)


def sage_forward(a_norm, x, params):
    """Forward pass of the 3-layer SAGE module as one fused Pallas call."""
    assert len(params) == 3, "kernel is specialized for the 3-layer SAGE module"
    n, f_in = x.shape
    f_out_final = params[-1][0].shape[1]

    feat_dims = [f_in] + [w_s.shape[1] for (w_s, _, _) in params]
    fp = _round_up(max(max(feat_dims), _LANE), _LANE)   # common padded feature width
    np_ = _round_up(max(n, _LANE), _LANE)               # padded node count

    def pad2(arr, rows, cols):
        r, c = arr.shape
        return jnp.pad(arr, ((0, rows - r), (0, cols - c)))

    # bf16 MXU operands, zero-padded to lane-dense shapes.
    a_p = pad2(a_norm, np_, np_).astype(jnp.bfloat16)
    x_p = pad2(x, np_, fp).astype(jnp.bfloat16)

    flat_inputs = [a_p, x_p]
    in_specs = [
        pl.BlockSpec((np_, np_), lambda i: (0, 0)),   # A_norm
        pl.BlockSpec((np_, fp), lambda i: (0, 0)),    # X
    ]
    for (w_self, w_neigh, bias) in params:
        w_cat = jnp.concatenate(
            [pad2(w_self, fp, fp), pad2(w_neigh, fp, fp)], axis=1
        ).astype(jnp.bfloat16)                        # [fp, 2*fp] = [W_self | W_neigh]
        b_p = pad2(bias.reshape(1, -1), 1, fp).astype(jnp.float32)
        flat_inputs += [w_cat, b_p]
        in_specs += [
            pl.BlockSpec((fp, 2 * fp), lambda i: (0, 0)),
            pl.BlockSpec((1, fp), lambda i: (0, 0)),
        ]

    out = pl.pallas_call(
        _fused_sage3_kernel,
        out_shape=jax.ShapeDtypeStruct((np_, fp), jnp.float32),
        grid=(1,),
        in_specs=in_specs,
        out_specs=pl.BlockSpec((np_, fp), lambda i: (0, 0)),
        scratch_shapes=[
            pltpu.VMEM((np_, fp), jnp.bfloat16),      # activation ping
            pltpu.VMEM((np_, fp), jnp.bfloat16),      # activation pong
        ],
        compiler_params=pltpu.CompilerParams(
            dimension_semantics=("arbitrary",),
            vmem_limit_bytes=32 * 1024 * 1024,
        ),
    )(*flat_inputs)

    return out[:n, :f_out_final]


def _reference_forward(a_norm, x, params):
    """Pure-JAX reference at the same precision as the kernel
    (bf16 operands, f32 accumulation, bf16 inter-layer activations)."""
    a = a_norm.astype(jnp.bfloat16)
    h = x.astype(jnp.bfloat16)
    n_layers = len(params)
    for l, (w_self, w_neigh, bias) in enumerate(params):
        ws = w_self.astype(jnp.bfloat16)
        wn = w_neigh.astype(jnp.bfloat16)
        h_self = jnp.dot(h, ws, preferred_element_type=jnp.float32)
        h_nb = jnp.dot(h, wn, preferred_element_type=jnp.float32).astype(jnp.bfloat16)
        h_agg = jnp.dot(a, h_nb, preferred_element_type=jnp.float32)
        out = h_self + h_agg + bias
        if l != n_layers - 1:
            out = jnp.maximum(out, 0.0)
            h = out.astype(jnp.bfloat16)
        else:
            h = out
    return h


def make_params(key, in_size, hid_size, out_size):
    sizes = [(in_size, hid_size), (hid_size, hid_size), (hid_size, out_size)]
    params = []
    for f_in, f_out in sizes:
        key, k1, k2, k3 = jax.random.split(key, 4)
        scale = 1.0 / jnp.sqrt(jnp.float32(f_in))
        w_self = jax.random.normal(k1, (f_in, f_out), jnp.float32) * scale
        w_neigh = jax.random.normal(k2, (f_in, f_out), jnp.float32) * scale
        bias = jax.random.normal(k3, (1, f_out), jnp.float32) * 0.01
        params.append((w_self, w_neigh, bias))
    return params


if __name__ == "__main__":
    key = jax.random.PRNGKey(0)
    k_graph, k_feat, k_params = jax.random.split(key, 3)

    # Small synthetic graph / features.
    num_nodes = 64
    in_size, hid_size, out_size = 32, 32, 16

    # Random binary adjacency (row i = in-neighbors of node i) + self loops so every
    # node has nonzero degree; row-normalize for the 'mean' aggregator.
    adj = (jax.random.uniform(k_graph, (num_nodes, num_nodes)) < 0.1).astype(jnp.float32)
    adj = jnp.maximum(adj, jnp.eye(num_nodes, dtype=jnp.float32))
    deg = jnp.sum(adj, axis=1, keepdims=True)
    a_norm = adj / deg

    x = jax.random.normal(k_feat, (num_nodes, in_size), jnp.float32)
    params = make_params(k_params, in_size, hid_size, out_size)

    out = sage_forward(a_norm, x, params)
    out = jax.block_until_ready(out)

    ref = _reference_forward(a_norm, x, params)
    assert out.shape == (num_nodes, out_size)
    assert jnp.allclose(out, ref, atol=1e-2, rtol=1e-2), "mismatch vs reference"

    print("KERNEL_OK")
</pallas_src>

<mosaic_0001>
module attributes {stable_mosaic.version = 11 : i64} {
  func.func @_fused_sage3_kernel(%arg0: i32, %arg1: memref<128x128xbf16, #tpu.memory_space<vmem>>, %arg2: memref<128x128xbf16, #tpu.memory_space<vmem>>, %arg3: memref<128x256xbf16, #tpu.memory_space<vmem>>, %arg4: memref<1x128xf32, #tpu.memory_space<vmem>>, %arg5: memref<128x256xbf16, #tpu.memory_space<vmem>>, %arg6: memref<1x128xf32, #tpu.memory_space<vmem>>, %arg7: memref<128x256xbf16, #tpu.memory_space<vmem>>, %arg8: memref<1x128xf32, #tpu.memory_space<vmem>>, %arg9: memref<128x128xf32, #tpu.memory_space<vmem>>, %arg10: memref<128x128xbf16, #tpu.memory_space<vmem>>, %arg11: memref<128x128xbf16, #tpu.memory_space<vmem>>) attributes {dimension_semantics = [#tpu.dimension_semantics<arbitrary>], iteration_bounds = array<i64: 1>, scalar_prefetch = 0 : i64, scratch_operands = 2 : i64, tpu.core_type = #tpu.core_type<tc>, window_params = [{pipeline_mode = #tpu.pipeline_mode<synchronous>, transform_indices = @transform_0, window_bounds = array<i64: 128, 128>}, {pipeline_mode = #tpu.pipeline_mode<synchronous>, transform_indices = @transform_1, window_bounds = array<i64: 128, 128>}, {pipeline_mode = #tpu.pipeline_mode<synchronous>, transform_indices = @transform_2, window_bounds = array<i64: 128, 256>}, {pipeline_mode = #tpu.pipeline_mode<synchronous>, transform_indices = @transform_3, window_bounds = array<i64: 1, 128>}, {pipeline_mode = #tpu.pipeline_mode<synchronous>, transform_indices = @transform_4, window_bounds = array<i64: 128, 256>}, {pipeline_mode = #tpu.pipeline_mode<synchronous>, transform_indices = @transform_5, window_bounds = array<i64: 1, 128>}, {pipeline_mode = #tpu.pipeline_mode<synchronous>, transform_indices = @transform_6, window_bounds = array<i64: 128, 256>}, {pipeline_mode = #tpu.pipeline_mode<synchronous>, transform_indices = @transform_7, window_bounds = array<i64: 1, 128>}, {pipeline_mode = #tpu.pipeline_mode<synchronous>, transform_indices = @transform_8, window_bounds = array<i64: 128, 128>}]} {
    %c0 = arith.constant 0 : index
    %c0_0 = arith.constant 0 : index
    %0 = vector.load %arg1[%c0, %c0_0] : memref<128x128xbf16, #tpu.memory_space<vmem>>, vector<128x128xbf16>
    %c0_1 = arith.constant 0 : index
    %c0_2 = arith.constant 0 : index
    %1 = vector.load %arg2[%c0_1, %c0_2] : memref<128x128xbf16, #tpu.memory_space<vmem>>, vector<128x128xbf16>
    %c0_3 = arith.constant 0 : index
    %c0_4 = arith.constant 0 : index
    %2 = vector.load %arg3[%c0_3, %c0_4] : memref<128x256xbf16, #tpu.memory_space<vmem>>, vector<128x256xbf16>
    %cst = arith.constant dense<0.000000e+00> : vector<128x256xf32>
    %3 = tpu.matmul %1, %2, %cst {dimension_numbers = #tpu.dot_dimension_numbers<[1], [0], [0], [1], [0, 0, 1, 1], [], []>} : vector<128x128xbf16>, vector<128x256xbf16>, vector<128x256xf32> -> vector<128x256xf32>
    %4 = vector.extract_strided_slice %3 {offsets = [0, 0], sizes = [128, 128], strides = [1, 1]} : vector<128x256xf32> to vector<128x128xf32>
    %5 = vector.extract_strided_slice %3 {offsets = [0, 128], sizes = [128, 128], strides = [1, 1]} : vector<128x256xf32> to vector<128x128xf32>
    %6 = arith.truncf %5 : vector<128x128xf32> to vector<128x128xbf16>
    %cst_5 = arith.constant dense<0.000000e+00> : vector<128x128xf32>
    %7 = tpu.matmul %0, %6, %cst_5 {dimension_numbers = #tpu.dot_dimension_numbers<[1], [0], [0], [1], [0, 0, 1, 1], [], []>} : vector<128x128xbf16>, vector<128x128xbf16>, vector<128x128xf32> -> vector<128x128xf32>
    %8 = arith.addf %4, %7 : vector<128x128xf32>
    %c0_6 = arith.constant 0 : index
    %c0_7 = arith.constant 0 : index
    %9 = vector.load %arg4[%c0_6, %c0_7] : memref<1x128xf32, #tpu.memory_space<vmem>>, vector<1x128xf32>
    %10 = vector.broadcast %9 : vector<1x128xf32> to vector<128x128xf32>
    %11 = arith.addf %8, %10 : vector<128x128xf32>
    %cst_8 = arith.constant 0.000000e+00 : f32
    %12 = vector.broadcast %cst_8 : f32 to vector<128x128xf32>
    %13 = arith.maximumf %11, %12 : vector<128x128xf32>
    %14 = arith.truncf %13 : vector<128x128xf32> to vector<128x128xbf16>
    %c0_9 = arith.constant 0 : index
    %c0_10 = arith.constant 0 : index
    %15 = vector.load %arg10[%c0_9, %c0_10] : memref<128x128xbf16, #tpu.memory_space<vmem>>, vector<128x128xbf16>
    tpu.vector_store %arg10[%c0_9, %c0_10], %14 {strides = array<i32>} : memref<128x128xbf16, #tpu.memory_space<vmem>>, vector<128x128xbf16>,
    %c0_11 = arith.constant 0 : index
    %c0_12 = arith.constant 0 : index
    %16 = vector.load %arg10[%c0_11, %c0_12] : memref<128x128xbf16, #tpu.memory_space<vmem>>, vector<128x128xbf16>
    %c0_13 = arith.constant 0 : index
    %c0_14 = arith.constant 0 : index
    %17 = vector.load %arg5[%c0_13, %c0_14] : memref<128x256xbf16, #tpu.memory_space<vmem>>, vector<128x256xbf16>
    %cst_15 = arith.constant dense<0.000000e+00> : vector<128x256xf32>
    %18 = tpu.matmul %16, %17, %cst_15 {dimension_numbers = #tpu.dot_dimension_numbers<[1], [0], [0], [1], [0, 0, 1, 1], [], []>} : vector<128x128xbf16>, vector<128x256xbf16>, vector<128x256xf32> -> vector<128x256xf32>
    %19 = vector.extract_strided_slice %18 {offsets = [0, 0], sizes = [128, 128], strides = [1, 1]} : vector<128x256xf32> to vector<128x128xf32>
    %20 = vector.extract_strided_slice %18 {offsets = [0, 128], sizes = [128, 128], strides = [1, 1]} : vector<128x256xf32> to vector<128x128xf32>
    %21 = arith.truncf %20 : vector<128x128xf32> to vector<128x128xbf16>
    %cst_16 = arith.constant dense<0.000000e+00> : vector<128x128xf32>
    %22 = tpu.matmul %0, %21, %cst_16 {dimension_numbers = #tpu.dot_dimension_numbers<[1], [0], [0], [1], [0, 0, 1, 1], [], []>} : vector<128x128xbf16>, vector<128x128xbf16>, vector<128x128xf32> -> vector<128x128xf32>
    %23 = arith.addf %19, %22 : vector<128x128xf32>
    %c0_17 = arith.constant 0 : index
    %c0_18 = arith.constant 0 : index
    %24 = vector.load %arg6[%c0_17, %c0_18] : memref<1x128xf32, #tpu.memory_space<vmem>>, vector<1x128xf32>
    %25 = vector.broadcast %24 : vector<1x128xf32> to vector<128x128xf32>
    %26 = arith.addf %23, %25 : vector<128x128xf32>
    %cst_19 = arith.constant 0.000000e+00 : f32
    %27 = vector.broadcast %cst_19 : f32 to vector<128x128xf32>
    %28 = arith.maximumf %26, %27 : vector<128x128xf32>
    %29 = arith.truncf %28 : vector<128x128xf32> to vector<128x128xbf16>
    %c0_20 = arith.constant 0 : index
    %c0_21 = arith.constant 0 : index
    %30 = vector.load %arg11[%c0_20, %c0_21] : memref<128x128xbf16, #tpu.memory_space<vmem>>, vector<128x128xbf16>
    tpu.vector_store %arg11[%c0_20, %c0_21], %29 {strides = array<i32>} : memref<128x128xbf16, #tpu.memory_space<vmem>>, vector<128x128xbf16>,
    %c0_22 = arith.constant 0 : index
    %c0_23 = arith.constant 0 : index
    %31 = vector.load %arg11[%c0_22, %c0_23] : memref<128x128xbf16, #tpu.memory_space<vmem>>, vector<128x128xbf16>
    %c0_24 = arith.constant 0 : index
    %c0_25 = arith.constant 0 : index
    %32 = vector.load %arg7[%c0_24, %c0_25] : memref<128x256xbf16, #tpu.memory_space<vmem>>, vector<128x256xbf16>
    %cst_26 = arith.constant dense<0.000000e+00> : vector<128x256xf32>
    %33 = tpu.matmul %31, %32, %cst_26 {dimension_numbers = #tpu.dot_dimension_numbers<[1], [0], [0], [1], [0, 0, 1, 1], [], []>} : vector<128x128xbf16>, vector<128x256xbf16>, vector<128x256xf32> -> vector<128x256xf32>
    %34 = vector.extract_strided_slice %33 {offsets = [0, 0], sizes = [128, 128], strides = [1, 1]} : vector<128x256xf32> to vector<128x128xf32>
    %35 = vector.extract_strided_slice %33 {offsets = [0, 128], sizes = [128, 128], strides = [1, 1]} : vector<128x256xf32> to vector<128x128xf32>
    %36 = arith.truncf %35 : vector<128x128xf32> to vector<128x128xbf16>
    %cst_27 = arith.constant dense<0.000000e+00> : vector<128x128xf32>
    %37 = tpu.matmul %0, %36, %cst_27 {dimension_numbers = #tpu.dot_dimension_numbers<[1], [0], [0], [1], [0, 0, 1, 1], [], []>} : vector<128x128xbf16>, vector<128x128xbf16>, vector<128x128xf32> -> vector<128x128xf32>
    %38 = arith.addf %34, %37 : vector<128x128xf32>
    %c0_28 = arith.constant 0 : index
    %c0_29 = arith.constant 0 : index
    %39 = vector.load %arg8[%c0_28, %c0_29] : memref<1x128xf32, #tpu.memory_space<vmem>>, vector<1x128xf32>
    %40 = vector.broadcast %39 : vector<1x128xf32> to vector<128x128xf32>
    %41 = arith.addf %38, %40 : vector<128x128xf32>
    %c0_30 = arith.constant 0 : index
    %c0_31 = arith.constant 0 : index
    %42 = vector.load %arg9[%c0_30, %c0_31] : memref<128x128xf32, #tpu.memory_space<vmem>>, vector<128x128xf32>
    tpu.vector_store %arg9[%c0_30, %c0_31], %41 {strides = array<i32>} : memref<128x128xf32, #tpu.memory_space<vmem>>, vector<128x128xf32>,
    return
  }
  func.func @transform_0(%arg0: i32) -> (i32, i32) {
    %c0_i32 = arith.constant 0 : i32
    %c0_i32_0 = arith.constant 0 : i32
    %c0_i32_1 = arith.constant 0 : i32
    return %c0_i32, %c0_i32_0 : i32, i32
  }
  func.func @transform_1(%arg0: i32) -> (i32, i32) {
    %c0_i32 = arith.constant 0 : i32
    %c0_i32_0 = arith.constant 0 : i32
    %c0_i32_1 = arith.constant 0 : i32
    return %c0_i32, %c0_i32_0 : i32, i32
  }
  func.func @transform_2(%arg0: i32) -> (i32, i32) {
    %c0_i32 = arith.constant 0 : i32
    %c0_i32_0 = arith.constant 0 : i32
    %c0_i32_1 = arith.constant 0 : i32
    return %c0_i32, %c0_i32_0 : i32, i32
  }
  func.func @transform_3(%arg0: i32) -> (i32, i32) {
    %c0_i32 = arith.constant 0 : i32
    %c0_i32_0 = arith.constant 0 : i32
    %c0_i32_1 = arith.constant 0 : i32
    return %c0_i32, %c0_i32_0 : i32, i32
  }
  func.func @transform_4(%arg0: i32) -> (i32, i32) {
    %c0_i32 = arith.constant 0 : i32
    %c0_i32_0 = arith.constant 0 : i32
    %c0_i32_1 = arith.constant 0 : i32
    return %c0_i32, %c0_i32_0 : i32, i32
  }
  func.func @transform_5(%arg0: i32) -> (i32, i32) {
    %c0_i32 = arith.constant 0 : i32
    %c0_i32_0 = arith.constant 0 : i32
    %c0_i32_1 = arith.constant 0 : i32
    return %c0_i32, %c0_i32_0 : i32, i32
  }
  func.func @transform_6(%arg0: i32) -> (i32, i32) {
    %c0_i32 = arith.constant 0 : i32
    %c0_i32_0 = arith.constant 0 : i32
    %c0_i32_1 = arith.constant 0 : i32
    return %c0_i32, %c0_i32_0 : i32, i32
  }
  func.func @transform_7(%arg0: i32) -> (i32, i32) {
    %c0_i32 = arith.constant 0 : i32
    %c0_i32_0 = arith.constant 0 : i32
    %c0_i32_1 = arith.constant 0 : i32
    return %c0_i32, %c0_i32_0 : i32, i32
  }
  func.func @transform_8(%arg0: i32) -> (i32, i32) {
    %c0_i32 = arith.constant 0 : i32
    %c0_i32_0 = arith.constant 0 : i32
    %c0_i32_1 = arith.constant 0 : i32
    return %c0_i32, %c0_i32_0 : i32, i32
  }
}

</mosaic_0001>

<llo_original>
// kernel: tpu_custom_call.1
$region0: #{tpu_custom_call.1}
  #allocation0 [shape = 'u32[]', space=smem, size = 0x4, offset = 0x4, fixed_abs, tag = 'smem constant byte address 0x4 - core index']
  #allocation1 [shape = 'u32[72,128]{1,0:T(1,128)}', space=vmem, size = 0x9000, scoped, tag = 'internal scratch']
  #allocation2 [shape = 'bf16[128,128]{1,0:T(8,128)(2,1)}', space=vmem, size = 0x8000, scoped, tag = 'scratch operand']
  #allocation3 [shape = 'bf16[128,128]{1,0:T(8,128)(2,1)}', space=vmem, size = 0x8000, scoped, tag = 'scratch operand']
  %s0 = inlined_call_operand.hbm [shape: bf16[128,128], index: 0, kind: input, shape index: {}]
  %s1 = inlined_call_operand.hbm [shape: bf16[128,128], index: 1, kind: input, shape index: {}]
  %s2 = inlined_call_operand.hbm [shape: bf16[128,256], index: 2, kind: input, shape index: {}]
  %s3 = inlined_call_operand.vmem [shape: f32[1,128], index: 3, kind: input, shape index: {}]
  %s4 = inlined_call_operand.hbm [shape: bf16[128,256], index: 4, kind: input, shape index: {}]
  %s5 = inlined_call_operand.vmem [shape: f32[1,128], index: 5, kind: input, shape index: {}]
  %s6 = inlined_call_operand.hbm [shape: bf16[128,256], index: 6, kind: input, shape index: {}]
  %s7 = inlined_call_operand.vmem [shape: f32[1,128], index: 7, kind: input, shape index: {}]
  %s8 = inlined_call_operand.hbm [shape: f32[128,128], index: 8, kind: output, shape index: {}]
  %s9 = sld [smem:[#allocation0]]
  $region62: #{tpu_custom_call.1} parent=0
    _
  %s11 = ssub.s32 1, %s9
  %s12 = scalar_select 0, %s11, %s9
  $region1: #{tpu_custom_call.1} parent=0
    #allocation4 [shape = 'u8[32768]{0}', space=vmem, size = 0x8000, scoped, tag = 'input window, operand 0, single buffered']
    #allocation5 [shape = 's32[1]{0}', space=sflag, size = 0x4, scoped, tag = 'scoped memory for tpu_custom_call.1']
    #allocation6 [shape = 's32[1]{0}', space=sflag, size = 0x4, scoped, tag = 'scoped memory for tpu_custom_call.1']
    #allocation7 [shape = 'u8[32768]{0}', space=vmem, size = 0x8000, scoped, tag = 'input window, operand 1, single buffered']
    #allocation8 [shape = 's32[1]{0}', space=sflag, size = 0x4, scoped, tag = 'scoped memory for tpu_custom_call.1']
    #allocation9 [shape = 'u8[65536]{0}', space=vmem, size = 0x10000, scoped, tag = 'input window, operand 2, single buffered']
    #allocation10 [shape = 'u8[65536]{0}', space=vmem, size = 0x10000, scoped, tag = 'input window, operand 4, single buffered']
    #allocation11 [shape = 's32[1]{0}', space=sflag, size = 0x4, scoped, tag = 'scoped memory for tpu_custom_call.1']
    #allocation12 [shape = 'u8[65536]{0}', space=vmem, size = 0x10000, scoped, tag = 'input window, operand 6, single buffered']
    #allocation13 [shape = 'u8[65536]{0}', space=vmem, size = 0x10000, scoped, tag = 'output window, operand 0, single buffered']
    %13 = vsyncpa [#allocation5], 0
    %14 = vsyncpa [#allocation8], 0
    %15 = vsyncpa [#allocation11], 0
    %16 = vsyncpa [#allocation6], 0
    // Predicated region
    $region2: #{tpu_custom_call.1} parent=1 // pred_check
      _
    $region3: #{tpu_custom_call.1} parent=1 // pred_check_branch
      %18 = sbr.rel (0) target = $region5
    $region4: #{tpu_custom_call.1} parent=1 // pred_region
      %20 = vsyncadd [#allocation5], 0
      %s21 = sshll.u32 %s0, 4
      %s22 = int_to_ptr.hbm [resolvable:$true] %s21
      %s23 = sshll.u32 [#allocation4], 4
      %s24 = int_to_ptr.vmem [resolvable:$true] %s23
      %29 = dma.hbm_to_vmem [thread:$0]  %s22, 1024, %s24, [#allocation5], 64, 64, 4
    $region5: #{tpu_custom_call.1} parent=1 // pred_fallthru
      _
    // Predicated region
    $region6: #{tpu_custom_call.1} parent=1 // pred_check
      _
    $region7: #{tpu_custom_call.1} parent=1 // pred_check_branch
      %31 = sbr.rel (0) target = $region9
    $region8: #{tpu_custom_call.1} parent=1 // pred_region
      %33 = vsyncadd [#allocation8], 0
      %s34 = sshll.u32 %s1, 4
      %s35 = int_to_ptr.hbm [resolvable:$true] %s34
      %s36 = sshll.u32 [#allocation7], 4
      %s37 = int_to_ptr.vmem [resolvable:$true] %s36
      %42 = dma.hbm_to_vmem [thread:$0]  %s35, 1024, %s37, [#allocation8], 64, 64, 4
    $region9: #{tpu_custom_call.1} parent=1 // pred_fallthru
      _
    // Predicated region
    $region10: #{tpu_custom_call.1} parent=1 // pred_check
      _
    $region11: #{tpu_custom_call.1} parent=1 // pred_check_branch
      %44 = sbr.rel (0) target = $region13
    $region12: #{tpu_custom_call.1} parent=1 // pred_region
      %46 = vsyncadd [#allocation8], 0
      %s47 = sshll.u32 %s2, 4
      %s48 = int_to_ptr.hbm [resolvable:$true] %s47
      %s49 = sshll.u32 [#allocation9], 4
      %s50 = int_to_ptr.vmem [resolvable:$true] %s49
      %55 = dma.hbm_to_vmem [thread:$0]  %s48, 2048, %s50, [#allocation8], 128, 128, 8
    $region13: #{tpu_custom_call.1} parent=1 // pred_fallthru
      _
    // Predicated region
    $region14: #{tpu_custom_call.1} parent=1 // pred_check
      _
    $region15: #{tpu_custom_call.1} parent=1 // pred_check_branch
      %57 = sbr.rel (0) target = $region17
    $region16: #{tpu_custom_call.1} parent=1 // pred_region
      _
    $region17: #{tpu_custom_call.1} parent=1 // pred_fallthru
      _
    // Predicated region
    $region18: #{tpu_custom_call.1} parent=1 // pred_check
      _
    $region19: #{tpu_custom_call.1} parent=1 // pred_check_branch
      %59 = sbr.rel (0) target = $region21
    $region20: #{tpu_custom_call.1} parent=1 // pred_region
      %61 = vsyncadd [#allocation11], 0
      %s62 = sshll.u32 %s4, 4
      %s63 = int_to_ptr.hbm [resolvable:$true] %s62
      %s64 = sshll.u32 [#allocation10], 4
      %s65 = int_to_ptr.vmem [resolvable:$true] %s64
      %70 = dma.hbm_to_vmem [thread:$0]  %s63, 2048, %s65, [#allocation11], 128, 128, 8
    $region21: #{tpu_custom_call.1} parent=1 // pred_fallthru
      _
    // Predicated region
    $region22: #{tpu_custom_call.1} parent=1 // pred_check
      _
    $region23: #{tpu_custom_call.1} parent=1 // pred_check_branch
      %72 = sbr.rel (0) target = $region25
    $region24: #{tpu_custom_call.1} parent=1 // pred_region
      _
    $region25: #{tpu_custom_call.1} parent=1 // pred_fallthru
      _
    // Predicated region
    $region26: #{tpu_custom_call.1} parent=1 // pred_check
      _
    $region27: #{tpu_custom_call.1} parent=1 // pred_check_branch
      %74 = sbr.rel (0) target = $region29
    $region28: #{tpu_custom_call.1} parent=1 // pred_region
      %76 = vsyncadd [#allocation11], 0
      %s77 = sshll.u32 %s6, 4
      %s78 = int_to_ptr.hbm [resolvable:$true] %s77
      %s79 = sshll.u32 [#allocation12], 4
      %s80 = int_to_ptr.vmem [resolvable:$true] %s79
      %85 = dma.hbm_to_vmem [thread:$0]  %s78, 2048, %s80, [#allocation11], 128, 128, 8
    $region29: #{tpu_custom_call.1} parent=1 // pred_fallthru
      _
    // Predicated region
    $region30: #{tpu_custom_call.1} parent=1 // pred_check
      _
    $region31: #{tpu_custom_call.1} parent=1 // pred_check_branch
      %87 = sbr.rel (0) target = $region33
    $region32: #{tpu_custom_call.1} parent=1 // pred_region
      _
    $region33: #{tpu_custom_call.1} parent=1 // pred_fallthru
      _
    // Predicated region
    $region34: #{tpu_custom_call.1} parent=1 // pred_check
      _
    $region35: #{tpu_custom_call.1} parent=1 // pred_check_branch
      %89 = sbr.rel (0) target = $region37
    $region36: #{tpu_custom_call.1} parent=1 // pred_region
      %91 = dma.done [#allocation5], 1024
    $region37: #{tpu_custom_call.1} parent=1 // pred_fallthru
      _
    // Predicated region
    $region38: #{tpu_custom_call.1} parent=1 // pred_check
      _
    $region39: #{tpu_custom_call.1} parent=1 // pred_check_branch
      %93 = sbr.rel (0) target = $region41
    $region40: #{tpu_custom_call.1} parent=1 // pred_region
      %95 = dma.done [#allocation8], 1024
    $region41: #{tpu_custom_call.1} parent=1 // pred_fallthru
      _
    // Predicated region
    $region42: #{tpu_custom_call.1} parent=1 // pred_check
      _
    $region43: #{tpu_custom_call.1} parent=1 // pred_check_branch
      %97 = sbr.rel (0) target = $region45
    $region44: #{tpu_custom_call.1} parent=1 // pred_region
      %99 = dma.done [#allocation8], 2048
    $region45: #{tpu_custom_call.1} parent=1 // pred_fallthru
      _
    // Predicated region
    $region46: #{tpu_custom_call.1} parent=1 // pred_check
      _
    $region47: #{tpu_custom_call.1} parent=1 // pred_check_branch
      %101 = sbr.rel (0) target = $region49
    $region48: #{tpu_custom_call.1} parent=1 // pred_region
      %103 = dma.done [#allocation11], 2048
    $region49: #{tpu_custom_call.1} parent=1 // pred_fallthru
      _
    // Predicated region
    $region50: #{tpu_custom_call.1} parent=1 // pred_check
      _
    $region51: #{tpu_custom_call.1} parent=1 // pred_check_branch
      %105 = sbr.rel (0) target = $region53
    $region52: #{tpu_custom_call.1} parent=1 // pred_region
      %107 = dma.done [#allocation11], 2048
    $region53: #{tpu_custom_call.1} parent=1 // pred_fallthru
      _
    %v108 = vld [vmem:[#allocation4] sm:$0xf]
    %v109 = vld [vmem:[#allocation4 + $0x4] sm:$0xf]
    %v110 = vld [vmem:[#allocation4 + $0x8] sm:$0xf]
    %v111 = vld [vmem:[#allocation4 + $0xc] sm:$0xf]
    %v112 = vld [vmem:[#allocation4 + $0x10] sm:$0xf]
    %v113 = vld [vmem:[#allocation4 + $0x14] sm:$0xf]
    %v114 = vld [vmem:[#allocation4 + $0x18] sm:$0xf]
    %v115 = vld [vmem:[#allocation4 + $0x1c] sm:$0xf]
    %v116 = vld [vmem:[#allocation4 + $0x20] sm:$0xf]
    %v117 = vld [vmem:[#allocation4 + $0x24] sm:$0xf]
    %v118 = vld [vmem:[#allocation4 + $0x28] sm:$0xf]
    %v119 = vld [vmem:[#allocation4 + $0x2c] sm:$0xf]
    %v120 = vld [vmem:[#allocation4 + $0x30] sm:$0xf]
    %v121 = vld [vmem:[#allocation4 + $0x34] sm:$0xf]
    %v122 = vld [vmem:[#allocation4 + $0x38] sm:$0xf]
    %v123 = vld [vmem:[#allocation4 + $0x3c] sm:$0xf]
    %v124 = vld [vmem:[#allocation7] sm:$0xf]
    %v125 = vld [vmem:[#allocation7 + $0x4] sm:$0xf]
    %v126 = vld [vmem:[#allocation7 + $0x8] sm:$0xf]
    %v127 = vld [vmem:[#allocation7 + $0xc] sm:$0xf]
    %v128 = vld [vmem:[#allocation7 + $0x10] sm:$0xf]
    %v129 = vld [vmem:[#allocation7 + $0x14] sm:$0xf]
    %v130 = vld [vmem:[#allocation7 + $0x18] sm:$0xf]
    %v131 = vld [vmem:[#allocation7 + $0x1c] sm:$0xf]
    %v132 = vld [vmem:[#allocation7 + $0x20] sm:$0xf]
    %v133 = vld [vmem:[#allocation7 + $0x24] sm:$0xf]
    %v134 = vld [vmem:[#allocation7 + $0x28] sm:$0xf]
    %v135 = vld [vmem:[#allocation7 + $0x2c] sm:$0xf]
    %v136 = vld [vmem:[#allocation7 + $0x30] sm:$0xf]
    %v137 = vld [vmem:[#allocation7 + $0x34] sm:$0xf]
    %v138 = vld [vmem:[#allocation7 + $0x38] sm:$0xf]
    %v139 = vld [vmem:[#allocation7 + $0x3c] sm:$0xf]
    %v140 = vld [vmem:[#allocation9] sm:$0xff]
    %v141 = vld [vmem:[#allocation9 + $0x8] sm:$0xff]
    %v142 = vld [vmem:[#allocation9 + $0x10] sm:$0xff]
    %v143 = vld [vmem:[#allocation9 + $0x18] sm:$0xff]
    %v144 = vld [vmem:[#allocation9 + $0x20] sm:$0xff]
    %v145 = vld [vmem:[#allocation9 + $0x28] sm:$0xff]
    %v146 = vld [vmem:[#allocation9 + $0x30] sm:$0xff]
    %v147 = vld [vmem:[#allocation9 + $0x38] sm:$0xff]
    %v148 = vld [vmem:[#allocation9 + $0x40] sm:$0xff]
    %v149 = vld [vmem:[#allocation9 + $0x48] sm:$0xff]
    %v150 = vld [vmem:[#allocation9 + $0x50] sm:$0xff]
    %v151 = vld [vmem:[#allocation9 + $0x58] sm:$0xff]
    %v152 = vld [vmem:[#allocation9 + $0x60] sm:$0xff]
    %v153 = vld [vmem:[#allocation9 + $0x68] sm:$0xff]
    %v154 = vld [vmem:[#allocation9 + $0x70] sm:$0xff]
    %v155 = vld [vmem:[#allocation9 + $0x78] sm:$0xff]
    %v172 = vunpack.c.l.b16 %v124
    %v173 = vunpack.c.l.b16 %v125
    %v174 = vunpack.c.l.b16 %v126
    %v175 = vunpack.c.l.b16 %v127
    %v176 = vunpack.c.l.b16 %v128
    %v177 = vunpack.c.l.b16 %v129
    %v178 = vunpack.c.l.b16 %v130
    %v179 = vunpack.c.l.b16 %v131
    %v180 = vunpack.c.l.b16 %v132
    %v181 = vunpack.c.l.b16 %v133
    %v182 = vunpack.c.l.b16 %v134
    %v183 = vunpack.c.l.b16 %v135
    %v184 = vunpack.c.l.b16 %v136
    %v185 = vunpack.c.l.b16 %v137
    %v186 = vunpack.c.l.b16 %v138
    %v187 = vunpack.c.l.b16 %v139
    %v188 = vpack.c.b16 %v173, %v172
    %v189 = vpack.c.b16 %v175, %v174
    %v190 = vpack.c.b16 %v177, %v176
    %v191 = vpack.c.b16 %v179, %v178
    %v192 = vpack.c.b16 %v181, %v180
    %v193 = vpack.c.b16 %v183, %v182
    %v194 = vpack.c.b16 %v185, %v184
    %v195 = vpack.c.b16 %v187, %v186
    %v220 = vunpack.c.l.b16 %v140
    %v221 = vunpack.c.h.b16 %v140
    %v222 = vunpack.c.l.b16 %v141
    %v223 = vunpack.c.h.b16 %v141
    %v224 = vunpack.c.l.b16 %v142
    %v225 = vunpack.c.h.b16 %v142
    %v226 = vunpack.c.l.b16 %v143
    %v227 = vunpack.c.h.b16 %v143
    %v228 = vunpack.c.l.b16 %v144
    %v229 = vunpack.c.h.b16 %v144
    %v230 = vunpack.c.l.b16 %v145
    %v231 = vunpack.c.h.b16 %v145
    %v232 = vunpack.c.l.b16 %v146
    %v233 = vunpack.c.h.b16 %v146
    %v234 = vunpack.c.l.b16 %v147
    %v235 = vunpack.c.h.b16 %v147
    %v236 = vunpack.c.l.b16 %v148
    %v237 = vunpack.c.h.b16 %v148
    %v238 = vunpack.c.l.b16 %v149
    %v239 = vunpack.c.h.b16 %v149
    %v240 = vunpack.c.l.b16 %v150
    %v241 = vunpack.c.h.b16 %v150
    %v242 = vunpack.c.l.b16 %v151
    %v243 = vunpack.c.h.b16 %v151
    %v244 = vunpack.c.l.b16 %v152
    %v245 = vunpack.c.h.b16 %v152
    %v246 = vunpack.c.l.b16 %v153
    %v247 = vunpack.c.h.b16 %v153
    %v248 = vunpack.c.l.b16 %v154
    %v249 = vunpack.c.h.b16 %v154
    %v250 = vunpack.c.l.b16 %v155
    %v251 = vunpack.c.h.b16 %v155
    %v252 = vpack.c.b16 %v222, %v220
    %v253 = vpack.c.b16 %v223, %v221
    %v254 = vpack.c.b16 %v226, %v224
    %v255 = vpack.c.b16 %v227, %v225
    %v256 = vpack.c.b16 %v230, %v228
    %v257 = vpack.c.b16 %v231, %v229
    %v258 = vpack.c.b16 %v234, %v232
    %v259 = vpack.c.b16 %v235, %v233
    %v260 = vpack.c.b16 %v238, %v236
    %v261 = vpack.c.b16 %v239, %v237
    %v262 = vpack.c.b16 %v242, %v240
    %v263 = vpack.c.b16 %v243, %v241
    %v264 = vpack.c.b16 %v246, %v244
    %v265 = vpack.c.b16 %v247, %v245
    %v266 = vpack.c.b16 %v250, %v248
    %v267 = vpack.c.b16 %v251, %v249
    %284 = vmatpush.bf16.msra.mxu0 %v266
    %285 = vmatpush.bf16.msra.mxu0 %v264
    %286 = vmatpush.bf16.msra.mxu0 %v262
    %287 = vmatpush.bf16.msra.mxu0 %v260
    %288 = vmatpush.bf16.msra.mxu0 %v258
    %289 = vmatpush.bf16.msra.mxu0 %v256
    %290 = vmatpush.bf16.msra.mxu0 %v254
    %291 = vmatpush.bf16.msra.mxu0 %v252
    %292 = vmatmul.bf16.gmra.mxu0 %v188
    %v293 = vpop.f32.mrf.mxu0
    %v294 = vadd.f32 0.0, %v293
    %v295 = vpop.f32.mrf.mxu0
    %v296 = vadd.f32 0.0, %v295
    %297 = vmatmul.bf16.gmra.mxu0 %v189
    %v298 = vpop.f32.mrf.mxu0
    %v299 = vadd.f32 0.0, %v298
    %v300 = vpop.f32.mrf.mxu0
    %v301 = vadd.f32 0.0, %v300
    %302 = vmatmul.bf16.gmra.mxu0 %v190
    %v303 = vpop.f32.mrf.mxu0
    %v304 = vadd.f32 0.0, %v303
    %v305 = vpop.f32.mrf.mxu0
    %v306 = vadd.f32 0.0, %v305
    %307 = vmatmul.bf16.gmra.mxu0 %v191
    %v308 = vpop.f32.mrf.mxu0
    %v309 = vadd.f32 0.0, %v308
    %v310 = vpop.f32.mrf.mxu0
    %v311 = vadd.f32 0.0, %v310
    %312 = vmatmul.bf16.gmra.mxu0 %v192
    %v313 = vpop.f32.mrf.mxu0
    %v314 = vadd.f32 0.0, %v313
    %v315 = vpop.f32.mrf.mxu0
    %v316 = vadd.f32 0.0, %v315
    %317 = vmatmul.bf16.gmra.mxu0 %v193
    %v318 = vpop.f32.mrf.mxu0
    %v319 = vadd.f32 0.0, %v318
    %v320 = vpop.f32.mrf.mxu0
    %v321 = vadd.f32 0.0, %v320
    %322 = vmatmul.bf16.gmra.mxu0 %v194
    %v323 = vpop.f32.mrf.mxu0
    %v324 = vadd.f32 0.0, %v323
    %v325 = vpop.f32.mrf.mxu0
    %v326 = vadd.f32 0.0, %v325
    %327 = vmatmul.bf16.gmra.mxu0 %v195
    %v328 = vpop.f32.mrf.mxu0
    %v329 = vadd.f32 0.0, %v328
    %v330 = vpop.f32.mrf.mxu0
    %v331 = vadd.f32 0.0, %v330
    %332 = vdwg.mxu0
    %333 = vmatpush.bf16.msra.mxu0 %v267
    %334 = vmatpush.bf16.msra.mxu0 %v265
    %335 = vmatpush.bf16.msra.mxu0 %v263
    %336 = vmatpush.bf16.msra.mxu0 %v261
    %337 = vmatpush.bf16.msra.mxu0 %v259
    %338 = vmatpush.bf16.msra.mxu0 %v257
    %339 = vmatpush.bf16.msra.mxu0 %v255
    %340 = vmatpush.bf16.msra.mxu0 %v253
    %341 = vmatmul.bf16.gmra.mxu0 %v188
    %v342 = vpop.f32.mrf.mxu0
    %v343 = vadd.f32 0.0, %v342
    %v344 = vpop.f32.mrf.mxu0
    %v345 = vadd.f32 0.0, %v344
    %346 = vmatmul.bf16.gmra.mxu0 %v189
    %v347 = vpop.f32.mrf.mxu0
    %v348 = vadd.f32 0.0, %v347
    %v349 = vpop.f32.mrf.mxu0
    %v350 = vadd.f32 0.0, %v349
    %351 = vmatmul.bf16.gmra.mxu0 %v190
    %v352 = vpop.f32.mrf.mxu0
    %v353 = vadd.f32 0.0, %v352
    %v354 = vpop.f32.mrf.mxu0
    %v355 = vadd.f32 0.0, %v354
    %356 = vmatmul.bf16.gmra.mxu0 %v191
    %v357 = vpop.f32.mrf.mxu0
    %v358 = vadd.f32 0.0, %v357
    %v359 = vpop.f32.mrf.mxu0
    %v360 = vadd.f32 0.0, %v359
    %361 = vmatmul.bf16.gmra.mxu0 %v192
    %v362 = vpop.f32.mrf.mxu0
    %v363 = vadd.f32 0.0, %v362
    %v364 = vpop.f32.mrf.mxu0
    %v365 = vadd.f32 0.0, %v364
    %366 = vmatmul.bf16.gmra.mxu0 %v193
    %v367 = vpop.f32.mrf.mxu0
    %v368 = vadd.f32 0.0, %v367
    %v369 = vpop.f32.mrf.mxu0
    %v370 = vadd.f32 0.0, %v369
    %371 = vmatmul.bf16.gmra.mxu0 %v194
    %v372 = vpop.f32.mrf.mxu0
    %v373 = vadd.f32 0.0, %v372
    %v374 = vpop.f32.mrf.mxu0
    %v375 = vadd.f32 0.0, %v374
    %376 = vmatmul.bf16.gmra.mxu0 %v195
    %v377 = vpop.f32.mrf.mxu0
    %v378 = vadd.f32 0.0, %v377
    %v379 = vpop.f32.mrf.mxu0
    %v380 = vadd.f32 0.0, %v379
    %381 = vdwg.mxu0
    %v382 = vpack.c.bf16 %v345, %v343
    %v383 = vpack.c.bf16 %v350, %v348
    %v384 = vpack.c.bf16 %v355, %v353
    %v385 = vpack.c.bf16 %v360, %v358
    %v386 = vpack.c.bf16 %v365, %v363
    %v387 = vpack.c.bf16 %v370, %v368
    %v388 = vpack.c.bf16 %v375, %v373
    %v389 = vpack.c.bf16 %v380, %v378
    %v406 = vunpack.c.l.b16 %v108
    %v407 = vunpack.c.l.b16 %v109
    %v408 = vunpack.c.l.b16 %v110
    %v409 = vunpack.c.l.b16 %v111
    %v410 = vunpack.c.l.b16 %v112
    %v411 = vunpack.c.l.b16 %v113
    %v412 = vunpack.c.l.b16 %v114
    %v413 = vunpack.c.l.b16 %v115
    %v414 = vunpack.c.l.b16 %v116
    %v415 = vunpack.c.l.b16 %v117
    %v416 = vunpack.c.l.b16 %v118
    %v417 = vunpack.c.l.b16 %v119
    %v418 = vunpack.c.l.b16 %v120
    %v419 = vunpack.c.l.b16 %v121
    %v420 = vunpack.c.l.b16 %v122
    %v421 = vunpack.c.l.b16 %v123
    %v422 = vpack.c.b16 %v407, %v406
    %v423 = vpack.c.b16 %v409, %v408
    %v424 = vpack.c.b16 %v411, %v410
    %v425 = vpack.c.b16 %v413, %v412
    %v426 = vpack.c.b16 %v415, %v414
    %v427 = vpack.c.b16 %v417, %v416
    %v428 = vpack.c.b16 %v419, %v418
    %v429 = vpack.c.b16 %v421, %v420
    %438 = vmatpush.bf16.msra.mxu0 %v389
    %439 = vmatpush.bf16.msra.mxu0 %v388
    %440 = vmatpush.bf16.msra.mxu0 %v387
    %441 = vmatpush.bf16.msra.mxu0 %v386
    %442 = vmatpush.bf16.msra.mxu0 %v385
    %443 = vmatpush.bf16.msra.mxu0 %v384
    %444 = vmatpush.bf16.msra.mxu0 %v383
    %445 = vmatpush.bf16.msra.mxu0 %v382
    %446 = vmatmul.bf16.gmra.mxu0 %v422
    %v447 = vpop.f32.mrf.mxu0
    %v448 = vadd.f32 0.0, %v447
    %v449 = vpop.f32.mrf.mxu0
    %v450 = vadd.f32 0.0, %v449
    %451 = vmatmul.bf16.gmra.mxu0 %v423
    %v452 = vpop.f32.mrf.mxu0
    %v453 = vadd.f32 0.0, %v452
    %v454 = vpop.f32.mrf.mxu0
    %v455 = vadd.f32 0.0, %v454
    %456 = vmatmul.bf16.gmra.mxu0 %v424
    %v457 = vpop.f32.mrf.mxu0
    %v458 = vadd.f32 0.0, %v457
    %v459 = vpop.f32.mrf.mxu0
    %v460 = vadd.f32 0.0, %v459
    %461 = vmatmul.bf16.gmra.mxu0 %v425
    %v462 = vpop.f32.mrf.mxu0
    %v463 = vadd.f32 0.0, %v462
    %v464 = vpop.f32.mrf.mxu0
    %v465 = vadd.f32 0.0, %v464
    %466 = vmatmul.bf16.gmra.mxu0 %v426
    %v467 = vpop.f32.mrf.mxu0
    %v468 = vadd.f32 0.0, %v467
    %v469 = vpop.f32.mrf.mxu0
    %v470 = vadd.f32 0.0, %v469
    %471 = vmatmul.bf16.gmra.mxu0 %v427
    %v472 = vpop.f32.mrf.mxu0
    %v473 = vadd.f32 0.0, %v472
    %v474 = vpop.f32.mrf.mxu0
    %v475 = vadd.f32 0.0, %v474
    %476 = vmatmul.bf16.gmra.mxu0 %v428
    %v477 = vpop.f32.mrf.mxu0
    %v478 = vadd.f32 0.0, %v477
    %v479 = vpop.f32.mrf.mxu0
    %v480 = vadd.f32 0.0, %v479
    %481 = vmatmul.bf16.gmra.mxu0 %v429
    %v482 = vpop.f32.mrf.mxu0
    %v483 = vadd.f32 0.0, %v482
    %v484 = vpop.f32.mrf.mxu0
    %v485 = vadd.f32 0.0, %v484
    %486 = vdwg.mxu0
    %v487 = vadd.f32 %v294, %v448
    %v488 = vadd.f32 %v296, %v450
    %v489 = vadd.f32 %v299, %v453
    %v490 = vadd.f32 %v301, %v455
    %v491 = vadd.f32 %v304, %v458
    %v492 = vadd.f32 %v306, %v460
    %v493 = vadd.f32 %v309, %v463
    %v494 = vadd.f32 %v311, %v465
    %v495 = vadd.f32 %v314, %v468
    %v496 = vadd.f32 %v316, %v470
    %v497 = vadd.f32 %v319, %v473
    %v498 = vadd.f32 %v321, %v475
    %v499 = vadd.f32 %v324, %v478
    %v500 = vadd.f32 %v326, %v480
    %v501 = vadd.f32 %v329, %v483
    %v502 = vadd.f32 %v331, %v485
    %v503 = vld [vmem:[%s3] sm:$0x1]
    %v505 = vperm.slane %v503, 0
    %v507 = vadd.f32 %v487, %v505
    %v508 = vadd.f32 %v488, %v505
    %v509 = vadd.f32 %v489, %v505
    %v510 = vadd.f32 %v490, %v505
    %v511 = vadd.f32 %v491, %v505
    %v512 = vadd.f32 %v492, %v505
    %v513 = vadd.f32 %v493, %v505
    %v514 = vadd.f32 %v494, %v505
    %v515 = vadd.f32 %v495, %v505
    %v516 = vadd.f32 %v496, %v505
    %v517 = vadd.f32 %v497, %v505
    %v518 = vadd.f32 %v498, %v505
    %v519 = vadd.f32 %v499, %v505
    %v520 = vadd.f32 %v500, %v505
    %v521 = vadd.f32 %v501, %v505
    %v522 = vadd.f32 %v502, %v505
    %v523 = vmax.f32 %v507, 0.0
    %v524 = vmax.f32 %v508, 0.0
    %v525 = vmax.f32 %v509, 0.0
    %v526 = vmax.f32 %v510, 0.0
    %v527 = vmax.f32 %v511, 0.0
    %v528 = vmax.f32 %v512, 0.0
    %v529 = vmax.f32 %v513, 0.0
    %v530 = vmax.f32 %v514, 0.0
    %v531 = vmax.f32 %v515, 0.0
    %v532 = vmax.f32 %v516, 0.0
    %v533 = vmax.f32 %v517, 0.0
    %v534 = vmax.f32 %v518, 0.0
    %v535 = vmax.f32 %v519, 0.0
    %v536 = vmax.f32 %v520, 0.0
    %v537 = vmax.f32 %v521, 0.0
    %v538 = vmax.f32 %v522, 0.0
    %v539 = vpack.c.bf16 %v523, %v523
    %v540 = vpack.c.bf16 %v524, %v524
    %v541 = vpack.c.bf16 %v525, %v525
    %v542 = vpack.c.bf16 %v526, %v526
    %v543 = vpack.c.bf16 %v527, %v527
    %v544 = vpack.c.bf16 %v528, %v528
    %v545 = vpack.c.bf16 %v529, %v529
    %v546 = vpack.c.bf16 %v530, %v530
    %v547 = vpack.c.bf16 %v531, %v531
    %v548 = vpack.c.bf16 %v532, %v532
    %v549 = vpack.c.bf16 %v533, %v533
    %v550 = vpack.c.bf16 %v534, %v534
    %v551 = vpack.c.bf16 %v535, %v535
    %v552 = vpack.c.bf16 %v536, %v536
    %v553 = vpack.c.bf16 %v537, %v537
    %v554 = vpack.c.bf16 %v538, %v538
    %555 = vst [vmem:[#allocation2] sm:$0xf] %v539
    %556 = vst [vmem:[#allocation2 + $0x4] sm:$0xf] %v540
    %557 = vst [vmem:[#allocation2 + $0x8] sm:$0xf] %v541
    %558 = vst [vmem:[#allocation2 + $0xc] sm:$0xf] %v542
    %559 = vst [vmem:[#allocation2 + $0x10] sm:$0xf] %v543
    %560 = vst [vmem:[#allocation2 + $0x14] sm:$0xf] %v544
    %561 = vst [vmem:[#allocation2 + $0x18] sm:$0xf] %v545
    %562 = vst [vmem:[#allocation2 + $0x1c] sm:$0xf] %v546
    %563 = vst [vmem:[#allocation2 + $0x20] sm:$0xf] %v547
    %564 = vst [vmem:[#allocation2 + $0x24] sm:$0xf] %v548
    %565 = vst [vmem:[#allocation2 + $0x28] sm:$0xf] %v549
    %566 = vst [vmem:[#allocation2 + $0x2c] sm:$0xf] %v550
    %567 = vst [vmem:[#allocation2 + $0x30] sm:$0xf] %v551
    %568 = vst [vmem:[#allocation2 + $0x34] sm:$0xf] %v552
    %569 = vst [vmem:[#allocation2 + $0x38] sm:$0xf] %v553
    %570 = vst [vmem:[#allocation2 + $0x3c] sm:$0xf] %v554
    %v571 = vld [vmem:[#allocation2] sm:$0xf]
    %v572 = vld [vmem:[#allocation2 + $0x4] sm:$0xf]
    %v573 = vld [vmem:[#allocation2 + $0x8] sm:$0xf]
    %v574 = vld [vmem:[#allocation2 + $0xc] sm:$0xf]
    %v575 = vld [vmem:[#allocation2 + $0x10] sm:$0xf]
    %v576 = vld [vmem:[#allocation2 + $0x14] sm:$0xf]
    %v577 = vld [vmem:[#allocation2 + $0x18] sm:$0xf]
    %v578 = vld [vmem:[#allocation2 + $0x1c] sm:$0xf]
    %v579 = vld [vmem:[#allocation2 + $0x20] sm:$0xf]
    %v580 = vld [vmem:[#allocation2 + $0x24] sm:$0xf]
    %v581 = vld [vmem:[#allocation2 + $0x28] sm:$0xf]
    %v582 = vld [vmem:[#allocation2 + $0x2c] sm:$0xf]
    %v583 = vld [vmem:[#allocation2 + $0x30] sm:$0xf]
    %v584 = vld [vmem:[#allocation2 + $0x34] sm:$0xf]
    %v585 = vld [vmem:[#allocation2 + $0x38] sm:$0xf]
    %v586 = vld [vmem:[#allocation2 + $0x3c] sm:$0xf]
    %v587 = vld [vmem:[#allocation10] sm:$0xff]
    %v588 = vld [vmem:[#allocation10 + $0x8] sm:$0xff]
    %v589 = vld [vmem:[#allocation10 + $0x10] sm:$0xff]
    %v590 = vld [vmem:[#allocation10 + $0x18] sm:$0xff]
    %v591 = vld [vmem:[#allocation10 + $0x20] sm:$0xff]
    %v592 = vld [vmem:[#allocation10 + $0x28] sm:$0xff]
    %v593 = vld [vmem:[#allocation10 + $0x30] sm:$0xff]
    %v594 = vld [vmem:[#allocation10 + $0x38] sm:$0xff]
    %v595 = vld [vmem:[#allocation10 + $0x40] sm:$0xff]
    %v596 = vld [vmem:[#allocation10 + $0x48] sm:$0xff]
    %v597 = vld [vmem:[#allocation10 + $0x50] sm:$0xff]
    %v598 = vld [vmem:[#allocation10 + $0x58] sm:$0xff]
    %v599 = vld [vmem:[#allocation10 + $0x60] sm:$0xff]
    %v600 = vld [vmem:[#allocation10 + $0x68] sm:$0xff]
    %v601 = vld [vmem:[#allocation10 + $0x70] sm:$0xff]
    %v602 = vld [vmem:[#allocation10 + $0x78] sm:$0xff]
    %v619 = vunpack.c.l.b16 %v571
    %v620 = vunpack.c.l.b16 %v572
    %v621 = vunpack.c.l.b16 %v573
    %v622 = vunpack.c.l.b16 %v574
    %v623 = vunpack.c.l.b16 %v575
    %v624 = vunpack.c.l.b16 %v576
    %v625 = vunpack.c.l.b16 %v577
    %v626 = vunpack.c.l.b16 %v578
    %v627 = vunpack.c.l.b16 %v579
    %v628 = vunpack.c.l.b16 %v580
    %v629 = vunpack.c.l.b16 %v581
    %v630 = vunpack.c.l.b16 %v582
    %v631 = vunpack.c.l.b16 %v583
    %v632 = vunpack.c.l.b16 %v584
    %v633 = vunpack.c.l.b16 %v585
    %v634 = vunpack.c.l.b16 %v586
    %v635 = vpack.c.b16 %v620, %v619
    %v636 = vpack.c.b16 %v622, %v621
    %v637 = vpack.c.b16 %v624, %v623
    %v638 = vpack.c.b16 %v626, %v625
    %v639 = vpack.c.b16 %v628, %v627
    %v640 = vpack.c.b16 %v630, %v629
    %v641 = vpack.c.b16 %v632, %v631
    %v642 = vpack.c.b16 %v634, %v633
    %v667 = vunpack.c.l.b16 %v587
    %v668 = vunpack.c.h.b16 %v587
    %v669 = vunpack.c.l.b16 %v588
    %v670 = vunpack.c.h.b16 %v588
    %v671 = vunpack.c.l.b16 %v589
    %v672 = vunpack.c.h.b16 %v589
    %v673 = vunpack.c.l.b16 %v590
    %v674 = vunpack.c.h.b16 %v590
    %v675 = vunpack.c.l.b16 %v591
    %v676 = vunpack.c.h.b16 %v591
    %v677 = vunpack.c.l.b16 %v592
    %v678 = vunpack.c.h.b16 %v592
    %v679 = vunpack.c.l.b16 %v593
    %v680 = vunpack.c.h.b16 %v593
    %v681 = vunpack.c.l.b16 %v594
    %v682 = vunpack.c.h.b16 %v594
    %v683 = vunpack.c.l.b16 %v595
    %v684 = vunpack.c.h.b16 %v595
    %v685 = vunpack.c.l.b16 %v596
    %v686 = vunpack.c.h.b16 %v596
    %v687 = vunpack.c.l.b16 %v597
    %v688 = vunpack.c.h.b16 %v597
    %v689 = vunpack.c.l.b16 %v598
    %v690 = vunpack.c.h.b16 %v598
    %v691 = vunpack.c.l.b16 %v599
    %v692 = vunpack.c.h.b16 %v599
    %v693 = vunpack.c.l.b16 %v600
    %v694 = vunpack.c.h.b16 %v600
    %v695 = vunpack.c.l.b16 %v601
    %v696 = vunpack.c.h.b16 %v601
    %v697 = vunpack.c.l.b16 %v602
    %v698 = vunpack.c.h.b16 %v602
    %v699 = vpack.c.b16 %v669, %v667
    %v700 = vpack.c.b16 %v670, %v668
    %v701 = vpack.c.b16 %v673, %v671
    %v702 = vpack.c.b16 %v674, %v672
    %v703 = vpack.c.b16 %v677, %v675
    %v704 = vpack.c.b16 %v678, %v676
    %v705 = vpack.c.b16 %v681, %v679
    %v706 = vpack.c.b16 %v682, %v680
    %v707 = vpack.c.b16 %v685, %v683
    %v708 = vpack.c.b16 %v686, %v684
    %v709 = vpack.c.b16 %v689, %v687
    %v710 = vpack.c.b16 %v690, %v688
    %v711 = vpack.c.b16 %v693, %v691
    %v712 = vpack.c.b16 %v694, %v692
    %v713 = vpack.c.b16 %v697, %v695
    %v714 = vpack.c.b16 %v698, %v696
    %731 = vmatpush.bf16.msra.mxu0 %v713
    %732 = vmatpush.bf16.msra.mxu0 %v711
    %733 = vmatpush.bf16.msra.mxu0 %v709
    %734 = vmatpush.bf16.msra.mxu0 %v707
    %735 = vmatpush.bf16.msra.mxu0 %v705
    %736 = vmatpush.bf16.msra.mxu0 %v703
    %737 = vmatpush.bf16.msra.mxu0 %v701
    %738 = vmatpush.bf16.msra.mxu0 %v699
    %739 = vmatmul.bf16.gmra.mxu0 %v635
    %v740 = vpop.f32.mrf.mxu0
    %v741 = vadd.f32 0.0, %v740
    %v742 = vpop.f32.mrf.mxu0
    %v743 = vadd.f32 0.0, %v742
    %744 = vmatmul.bf16.gmra.mxu0 %v636
    %v745 = vpop.f32.mrf.mxu0
    %v746 = vadd.f32 0.0, %v745
    %v747 = vpop.f32.mrf.mxu0
    %v748 = vadd.f32 0.0, %v747
    %749 = vmatmul.bf16.gmra.mxu0 %v637
    %v750 = vpop.f32.mrf.mxu0
    %v751 = vadd.f32 0.0, %v750
    %v752 = vpop.f32.mrf.mxu0
    %v753 = vadd.f32 0.0, %v752
    %754 = vmatmul.bf16.gmra.mxu0 %v638
    %v755 = vpop.f32.mrf.mxu0
    %v756 = vadd.f32 0.0, %v755
    %v757 = vpop.f32.mrf.mxu0
    %v758 = vadd.f32 0.0, %v757
    %759 = vmatmul.bf16.gmra.mxu0 %v639
    %v760 = vpop.f32.mrf.mxu0
    %v761 = vadd.f32 0.0, %v760
    %v762 = vpop.f32.mrf.mxu0
    %v763 = vadd.f32 0.0, %v762
    %764 = vmatmul.bf16.gmra.mxu0 %v640
    %v765 = vpop.f32.mrf.mxu0
    %v766 = vadd.f32 0.0, %v765
    %v767 = vpop.f32.mrf.mxu0
    %v768 = vadd.f32 0.0, %v767
    %769 = vmatmul.bf16.gmra.mxu0 %v641
    %v770 = vpop.f32.mrf.mxu0
    %v771 = vadd.f32 0.0, %v770
    %v772 = vpop.f32.mrf.mxu0
    %v773 = vadd.f32 0.0, %v772
    %774 = vmatmul.bf16.gmra.mxu0 %v642
    %v775 = vpop.f32.mrf.mxu0
    %v776 = vadd.f32 0.0, %v775
    %v777 = vpop.f32.mrf.mxu0
    %v778 = vadd.f32 0.0, %v777
    %779 = vdwg.mxu0
    %780 = vmatpush.bf16.msra.mxu0 %v714
    %781 = vmatpush.bf16.msra.mxu0 %v712
    %782 = vmatpush.bf16.msra.mxu0 %v710
    %783 = vmatpush.bf16.msra.mxu0 %v708
    %784 = vmatpush.bf16.msra.mxu0 %v706
    %785 = vmatpush.bf16.msra.mxu0 %v704
    %786 = vmatpush.bf16.msra.mxu0 %v702
    %787 = vmatpush.bf16.msra.mxu0 %v700
    %788 = vmatmul.bf16.gmra.mxu0 %v635
    %v789 = vpop.f32.mrf.mxu0
    %v790 = vadd.f32 0.0, %v789
    %v791 = vpop.f32.mrf.mxu0
    %v792 = vadd.f32 0.0, %v791
    %793 = vmatmul.bf16.gmra.mxu0 %v636
    %v794 = vpop.f32.mrf.mxu0
    %v795 = vadd.f32 0.0, %v794
    %v796 = vpop.f32.mrf.mxu0
    %v797 = vadd.f32 0.0, %v796
    %798 = vmatmul.bf16.gmra.mxu0 %v637
    %v799 = vpop.f32.mrf.mxu0
    %v800 = vadd.f32 0.0, %v799
    %v801 = vpop.f32.mrf.mxu0
    %v802 = vadd.f32 0.0, %v801
    %803 = vmatmul.bf16.gmra.mxu0 %v638
    %v804 = vpop.f32.mrf.mxu0
    %v805 = vadd.f32 0.0, %v804
    %v806 = vpop.f32.mrf.mxu0
    %v807 = vadd.f32 0.0, %v806
    %808 = vmatmul.bf16.gmra.mxu0 %v639
    %v809 = vpop.f32.mrf.mxu0
    %v810 = vadd.f32 0.0, %v809
    %v811 = vpop.f32.mrf.mxu0
    %v812 = vadd.f32 0.0, %v811
    %813 = vmatmul.bf16.gmra.mxu0 %v640
    %v814 = vpop.f32.mrf.mxu0
    %v815 = vadd.f32 0.0, %v814
    %v816 = vpop.f32.mrf.mxu0
    %v817 = vadd.f32 0.0, %v816
    %818 = vmatmul.bf16.gmra.mxu0 %v641
    %v819 = vpop.f32.mrf.mxu0
    %v820 = vadd.f32 0.0, %v819
    %v821 = vpop.f32.mrf.mxu0
    %v822 = vadd.f32 0.0, %v821
    %823 = vmatmul.bf16.gmra.mxu0 %v642
    %v824 = vpop.f32.mrf.mxu0
    %v825 = vadd.f32 0.0, %v824
    %v826 = vpop.f32.mrf.mxu0
    %v827 = vadd.f32 0.0, %v826
    %828 = vdwg.mxu0
    %v829 = vpack.c.bf16 %v792, %v790
    %v830 = vpack.c.bf16 %v797, %v795
    %v831 = vpack.c.bf16 %v802, %v800
    %v832 = vpack.c.bf16 %v807, %v805
    %v833 = vpack.c.bf16 %v812, %v810
    %v834 = vpack.c.bf16 %v817, %v815
    %v835 = vpack.c.bf16 %v822, %v820
    %v836 = vpack.c.bf16 %v827, %v825
    %837 = vmatpush.bf16.msra.mxu0 %v836
    %838 = vmatpush.bf16.msra.mxu0 %v835
    %839 = vmatpush.bf16.msra.mxu0 %v834
    %840 = vmatpush.bf16.msra.mxu0 %v833
    %841 = vmatpush.bf16.msra.mxu0 %v832
    %842 = vmatpush.bf16.msra.mxu0 %v831
    %843 = vmatpush.bf16.msra.mxu0 %v830
    %844 = vmatpush.bf16.msra.mxu0 %v829
    %845 = vmatmul.bf16.gmra.mxu0 %v422
    %v846 = vpop.f32.mrf.mxu0
    %v847 = vadd.f32 0.0, %v846
    %v848 = vpop.f32.mrf.mxu0
    %v849 = vadd.f32 0.0, %v848
    %850 = vmatmul.bf16.gmra.mxu0 %v423
    %v851 = vpop.f32.mrf.mxu0
    %v852 = vadd.f32 0.0, %v851
    %v853 = vpop.f32.mrf.mxu0
    %v854 = vadd.f32 0.0, %v853
    %855 = vmatmul.bf16.gmra.mxu0 %v424
    %v856 = vpop.f32.mrf.mxu0
    %v857 = vadd.f32 0.0, %v856
    %v858 = vpop.f32.mrf.mxu0
    %v859 = vadd.f32 0.0, %v858
    %860 = vmatmul.bf16.gmra.mxu0 %v425
    %v861 = vpop.f32.mrf.mxu0
    %v862 = vadd.f32 0.0, %v861
    %v863 = vpop.f32.mrf.mxu0
    %v864 = vadd.f32 0.0, %v863
    %865 = vmatmul.bf16.gmra.mxu0 %v426
    %v866 = vpop.f32.mrf.mxu0
    %v867 = vadd.f32 0.0, %v866
    %v868 = vpop.f32.mrf.mxu0
    %v869 = vadd.f32 0.0, %v868
    %870 = vmatmul.bf16.gmra.mxu0 %v427
    %v871 = vpop.f32.mrf.mxu0
    %v872 = vadd.f32 0.0, %v871
    %v873 = vpop.f32.mrf.mxu0
    %v874 = vadd.f32 0.0, %v873
    %875 = vmatmul.bf16.gmra.mxu0 %v428
    %v876 = vpop.f32.mrf.mxu0
    %v877 = vadd.f32 0.0, %v876
    %v878 = vpop.f32.mrf.mxu0
    %v879 = vadd.f32 0.0, %v878
    %880 = vmatmul.bf16.gmra.mxu0 %v429
    %v881 = vpop.f32.mrf.mxu0
    %v882 = vadd.f32 0.0, %v881
    %v883 = vpop.f32.mrf.mxu0
    %v884 = vadd.f32 0.0, %v883
    %885 = vdwg.mxu0
    %v886 = vadd.f32 %v741, %v847
    %v887 = vadd.f32 %v743, %v849
    %v888 = vadd.f32 %v746, %v852
    %v889 = vadd.f32 %v748, %v854
    %v890 = vadd.f32 %v751, %v857
    %v891 = vadd.f32 %v753, %v859
    %v892 = vadd.f32 %v756, %v862
    %v893 = vadd.f32 %v758, %v864
    %v894 = vadd.f32 %v761, %v867
    %v895 = vadd.f32 %v763, %v869
    %v896 = vadd.f32 %v766, %v872
    %v897 = vadd.f32 %v768, %v874
    %v898 = vadd.f32 %v771, %v877
    %v899 = vadd.f32 %v773, %v879
    %v900 = vadd.f32 %v776, %v882
    %v901 = vadd.f32 %v778, %v884
    %v902 = vld [vmem:[%s5] sm:$0x1]
    %v904 = vperm.slane %v902, 0
    %v906 = vadd.f32 %v886, %v904
    %v907 = vadd.f32 %v887, %v904
    %v908 = vadd.f32 %v888, %v904
    %v909 = vadd.f32 %v889, %v904
    %v910 = vadd.f32 %v890, %v904
    %v911 = vadd.f32 %v891, %v904
    %v912 = vadd.f32 %v892, %v904
    %v913 = vadd.f32 %v893, %v904
    %v914 = vadd.f32 %v894, %v904
    %v915 = vadd.f32 %v895, %v904
    %v916 = vadd.f32 %v896, %v904
    %v917 = vadd.f32 %v897, %v904
    %v918 = vadd.f32 %v898, %v904
    %v919 = vadd.f32 %v899, %v904
    %v920 = vadd.f32 %v900, %v904
    %v921 = vadd.f32 %v901, %v904
    %v922 = vmax.f32 %v906, 0.0
    %v923 = vmax.f32 %v907, 0.0
    %v924 = vmax.f32 %v908, 0.0
    %v925 = vmax.f32 %v909, 0.0
    %v926 = vmax.f32 %v910, 0.0
    %v927 = vmax.f32 %v911, 0.0
    %v928 = vmax.f32 %v912, 0.0
    %v929 = vmax.f32 %v913, 0.0
    %v930 = vmax.f32 %v914, 0.0
    %v931 = vmax.f32 %v915, 0.0
    %v932 = vmax.f32 %v916, 0.0
    %v933 = vmax.f32 %v917, 0.0
    %v934 = vmax.f32 %v918, 0.0
    %v935 = vmax.f32 %v919, 0.0
    %v936 = vmax.f32 %v920, 0.0
    %v937 = vmax.f32 %v921, 0.0
    %v938 = vpack.c.bf16 %v922, %v922
    %v939 = vpack.c.bf16 %v923, %v923
    %v940 = vpack.c.bf16 %v924, %v924
    %v941 = vpack.c.bf16 %v925, %v925
    %v942 = vpack.c.bf16 %v926, %v926
    %v943 = vpack.c.bf16 %v927, %v927
    %v944 = vpack.c.bf16 %v928, %v928
    %v945 = vpack.c.bf16 %v929, %v929
    %v946 = vpack.c.bf16 %v930, %v930
    %v947 = vpack.c.bf16 %v931, %v931
    %v948 = vpack.c.bf16 %v932, %v932
    %v949 = vpack.c.bf16 %v933, %v933
    %v950 = vpack.c.bf16 %v934, %v934
    %v951 = vpack.c.bf16 %v935, %v935
    %v952 = vpack.c.bf16 %v936, %v936
    %v953 = vpack.c.bf16 %v937, %v937
    %954 = vst [vmem:[#allocation3] sm:$0xf] %v938
    %955 = vst [vmem:[#allocation3 + $0x4] sm:$0xf] %v939
    %956 = vst [vmem:[#allocation3 + $0x8] sm:$0xf] %v940
    %957 = vst [vmem:[#allocation3 + $0xc] sm:$0xf] %v941
    %958 = vst [vmem:[#allocation3 + $0x10] sm:$0xf] %v942
    %959 = vst [vmem:[#allocation3 + $0x14] sm:$0xf] %v943
    %960 = vst [vmem:[#allocation3 + $0x18] sm:$0xf] %v944
    %961 = vst [vmem:[#allocation3 + $0x1c] sm:$0xf] %v945
    %962 = vst [vmem:[#allocation3 + $0x20] sm:$0xf] %v946
    %963 = vst [vmem:[#allocation3 + $0x24] sm:$0xf] %v947
    %964 = vst [vmem:[#allocation3 + $0x28] sm:$0xf] %v948
    %965 = vst [vmem:[#allocation3 + $0x2c] sm:$0xf] %v949
    %966 = vst [vmem:[#allocation3 + $0x30] sm:$0xf] %v950
    %967 = vst [vmem:[#allocation3 + $0x34] sm:$0xf] %v951
    %968 = vst [vmem:[#allocation3 + $0x38] sm:$0xf] %v952
    %969 = vst [vmem:[#allocation3 + $0x3c] sm:$0xf] %v953
    %v970 = vld [vmem:[#allocation3] sm:$0xf]
    %v971 = vld [vmem:[#allocation3 + $0x4] sm:$0xf]
    %v972 = vld [vmem:[#allocation3 + $0x8] sm:$0xf]
    %v973 = vld [vmem:[#allocation3 + $0xc] sm:$0xf]
    %v974 = vld [vmem:[#allocation3 + $0x10] sm:$0xf]
    %v975 = vld [vmem:[#allocation3 + $0x14] sm:$0xf]
    %v976 = vld [vmem:[#allocation3 + $0x18] sm:$0xf]
    %v977 = vld [vmem:[#allocation3 + $0x1c] sm:$0xf]
    %v978 = vld [vmem:[#allocation3 + $0x20] sm:$0xf]
    %v979 = vld [vmem:[#allocation3 + $0x24] sm:$0xf]
    %v980 = vld [vmem:[#allocation3 + $0x28] sm:$0xf]
    %v981 = vld [vmem:[#allocation3 + $0x2c] sm:$0xf]
    %v982 = vld [vmem:[#allocation3 + $0x30] sm:$0xf]
    %v983 = vld [vmem:[#allocation3 + $0x34] sm:$0xf]
    %v984 = vld [vmem:[#allocation3 + $0x38] sm:$0xf]
    %v985 = vld [vmem:[#allocation3 + $0x3c] sm:$0xf]
    %v986 = vld [vmem:[#allocation12] sm:$0xff]
    %v987 = vld [vmem:[#allocation12 + $0x8] sm:$0xff]
    %v988 = vld [vmem:[#allocation12 + $0x10] sm:$0xff]
    %v989 = vld [vmem:[#allocation12 + $0x18] sm:$0xff]
    %v990 = vld [vmem:[#allocation12 + $0x20] sm:$0xff]
    %v991 = vld [vmem:[#allocation12 + $0x28] sm:$0xff]
    %v992 = vld [vmem:[#allocation12 + $0x30] sm:$0xff]
    %v993 = vld [vmem:[#allocation12 + $0x38] sm:$0xff]
    %v994 = vld [vmem:[#allocation12 + $0x40] sm:$0xff]
    %v995 = vld [vmem:[#allocation12 + $0x48] sm:$0xff]
    %v996 = vld [vmem:[#allocation12 + $0x50] sm:$0xff]
    %v997 = vld [vmem:[#allocation12 + $0x58] sm:$0xff]
    %v998 = vld [vmem:[#allocation12 + $0x60] sm:$0xff]
    %v999 = vld [vmem:[#allocation12 + $0x68] sm:$0xff]
    %v1000 = vld [vmem:[#allocation12 + $0x70] sm:$0xff]
    %v1001 = vld [vmem:[#allocation12 + $0x78] sm:$0xff]
    %v1018 = vunpack.c.l.b16 %v970
    %v1019 = vunpack.c.l.b16 %v971
    %v1020 = vunpack.c.l.b16 %v972
    %v1021 = vunpack.c.l.b16 %v973
    %v1022 = vunpack.c.l.b16 %v974
    %v1023 = vunpack.c.l.b16 %v975
    %v1024 = vunpack.c.l.b16 %v976
    %v1025 = vunpack.c.l.b16 %v977
    %v1026 = vunpack.c.l.b16 %v978
    %v1027 = vunpack.c.l.b16 %v979
    %v1028 = vunpack.c.l.b16 %v980
    %v1029 = vunpack.c.l.b16 %v981
    %v1030 = vunpack.c.l.b16 %v982
    %v1031 = vunpack.c.l.b16 %v983
    %v1032 = vunpack.c.l.b16 %v984
    %v1033 = vunpack.c.l.b16 %v985
    %v1034 = vpack.c.b16 %v1019, %v1018
    %v1035 = vpack.c.b16 %v1021, %v1020
    %v1036 = vpack.c.b16 %v1023, %v1022
    %v1037 = vpack.c.b16 %v1025, %v1024
    %v1038 = vpack.c.b16 %v1027, %v1026
    %v1039 = vpack.c.b16 %v1029, %v1028
    %v1040 = vpack.c.b16 %v1031, %v1030
    %v1041 = vpack.c.b16 %v1033, %v1032
    %v1066 = vunpack.c.l.b16 %v986
    %v1067 = vunpack.c.h.b16 %v986
    %v1068 = vunpack.c.l.b16 %v987
    %v1069 = vunpack.c.h.b16 %v987
    %v1070 = vunpack.c.l.b16 %v988
    %v1071 = vunpack.c.h.b16 %v988
    %v1072 = vunpack.c.l.b16 %v989
    %v1073 = vunpack.c.h.b16 %v989
    %v1074 = vunpack.c.l.b16 %v990
    %v1075 = vunpack.c.h.b16 %v990
    %v1076 = vunpack.c.l.b16 %v991
    %v1077 = vunpack.c.h.b16 %v991
    %v1078 = vunpack.c.l.b16 %v992
    %v1079 = vunpack.c.h.b16 %v992
    %v1080 = vunpack.c.l.b16 %v993
    %v1081 = vunpack.c.h.b16 %v993
    %v1082 = vunpack.c.l.b16 %v994
    %v1083 = vunpack.c.h.b16 %v994
    %v1084 = vunpack.c.l.b16 %v995
    %v1085 = vunpack.c.h.b16 %v995
    %v1086 = vunpack.c.l.b16 %v996
    %v1087 = vunpack.c.h.b16 %v996
    %v1088 = vunpack.c.l.b16 %v997
    %v1089 = vunpack.c.h.b16 %v997
    %v1090 = vunpack.c.l.b16 %v998
    %v1091 = vunpack.c.h.b16 %v998
    %v1092 = vunpack.c.l.b16 %v999
    %v1093 = vunpack.c.h.b16 %v999
    %v1094 = vunpack.c.l.b16 %v1000
    %v1095 = vunpack.c.h.b16 %v1000
    %v1096 = vunpack.c.l.b16 %v1001
    %v1097 = vunpack.c.h.b16 %v1001
    %v1098 = vpack.c.b16 %v1068, %v1066
    %v1099 = vpack.c.b16 %v1069, %v1067
    %v1100 = vpack.c.b16 %v1072, %v1070
    %v1101 = vpack.c.b16 %v1073, %v1071
    %v1102 = vpack.c.b16 %v1076, %v1074
    %v1103 = vpack.c.b16 %v1077, %v1075
    %v1104 = vpack.c.b16 %v1080, %v1078
    %v1105 = vpack.c.b16 %v1081, %v1079
    %v1106 = vpack.c.b16 %v1084, %v1082
    %v1107 = vpack.c.b16 %v1085, %v1083
    %v1108 = vpack.c.b16 %v1088, %v1086
    %v1109 = vpack.c.b16 %v1089, %v1087
    %v1110 = vpack.c.b16 %v1092, %v1090
    %v1111 = vpack.c.b16 %v1093, %v1091
    %v1112 = vpack.c.b16 %v1096, %v1094
    %v1113 = vpack.c.b16 %v1097, %v1095
    %1130 = vmatpush.bf16.msra.mxu0 %v1112
    %1131 = vmatpush.bf16.msra.mxu0 %v1110
    %1132 = vmatpush.bf16.msra.mxu0 %v1108
    %1133 = vmatpush.bf16.msra.mxu0 %v1106
    %1134 = vmatpush.bf16.msra.mxu0 %v1104
    %1135 = vmatpush.bf16.msra.mxu0 %v1102
    %1136 = vmatpush.bf16.msra.mxu0 %v1100
    %1137 = vmatpush.bf16.msra.mxu0 %v1098
    %1138 = vmatmul.bf16.gmra.mxu0 %v1034
    %v1139 = vpop.f32.mrf.mxu0
    %v1140 = vadd.f32 0.0, %v1139
    %v1141 = vpop.f32.mrf.mxu0
    %v1142 = vadd.f32 0.0, %v1141
    %1143 = vmatmul.bf16.gmra.mxu0 %v1035
    %v1144 = vpop.f32.mrf.mxu0
    %v1145 = vadd.f32 0.0, %v1144
    %v1146 = vpop.f32.mrf.mxu0
    %v1147 = vadd.f32 0.0, %v1146
    %1148 = vmatmul.bf16.gmra.mxu0 %v1036
    %v1149 = vpop.f32.mrf.mxu0
    %v1150 = vadd.f32 0.0, %v1149
    %v1151 = vpop.f32.mrf.mxu0
    %v1152 = vadd.f32 0.0, %v1151
    %1153 = vmatmul.bf16.gmra.mxu0 %v1037
    %v1154 = vpop.f32.mrf.mxu0
    %v1155 = vadd.f32 0.0, %v1154
    %v1156 = vpop.f32.mrf.mxu0
    %v1157 = vadd.f32 0.0, %v1156
    %1158 = vmatmul.bf16.gmra.mxu0 %v1038
    %v1159 = vpop.f32.mrf.mxu0
    %v1160 = vadd.f32 0.0, %v1159
    %v1161 = vpop.f32.mrf.mxu0
    %v1162 = vadd.f32 0.0, %v1161
    %1163 = vmatmul.bf16.gmra.mxu0 %v1039
    %v1164 = vpop.f32.mrf.mxu0
    %v1165 = vadd.f32 0.0, %v1164
    %v1166 = vpop.f32.mrf.mxu0
    %v1167 = vadd.f32 0.0, %v1166
    %1168 = vmatmul.bf16.gmra.mxu0 %v1040
    %v1169 = vpop.f32.mrf.mxu0
    %v1170 = vadd.f32 0.0, %v1169
    %v1171 = vpop.f32.mrf.mxu0
    %v1172 = vadd.f32 0.0, %v1171
    %1173 = vmatmul.bf16.gmra.mxu0 %v1041
    %v1174 = vpop.f32.mrf.mxu0
    %v1175 = vadd.f32 0.0, %v1174
    %v1176 = vpop.f32.mrf.mxu0
    %v1177 = vadd.f32 0.0, %v1176
    %1178 = vdwg.mxu0
    %1179 = vmatpush.bf16.msra.mxu0 %v1113
    %1180 = vmatpush.bf16.msra.mxu0 %v1111
    %1181 = vmatpush.bf16.msra.mxu0 %v1109
    %1182 = vmatpush.bf16.msra.mxu0 %v1107
    %1183 = vmatpush.bf16.msra.mxu0 %v1105
    %1184 = vmatpush.bf16.msra.mxu0 %v1103
    %1185 = vmatpush.bf16.msra.mxu0 %v1101
    %1186 = vmatpush.bf16.msra.mxu0 %v1099
    %1187 = vmatmul.bf16.gmra.mxu0 %v1034
    %v1188 = vpop.f32.mrf.mxu0
    %v1189 = vadd.f32 0.0, %v1188
    %v1190 = vpop.f32.mrf.mxu0
    %v1191 = vadd.f32 0.0, %v1190
    %1192 = vmatmul.bf16.gmra.mxu0 %v1035
    %v1193 = vpop.f32.mrf.mxu0
    %v1194 = vadd.f32 0.0, %v1193
    %v1195 = vpop.f32.mrf.mxu0
    %v1196 = vadd.f32 0.0, %v1195
    %1197 = vmatmul.bf16.gmra.mxu0 %v1036
    %v1198 = vpop.f32.mrf.mxu0
    %v1199 = vadd.f32 0.0, %v1198
    %v1200 = vpop.f32.mrf.mxu0
    %v1201 = vadd.f32 0.0, %v1200
    %1202 = vmatmul.bf16.gmra.mxu0 %v1037
    %v1203 = vpop.f32.mrf.mxu0
    %v1204 = vadd.f32 0.0, %v1203
    %v1205 = vpop.f32.mrf.mxu0
    %v1206 = vadd.f32 0.0, %v1205
    %1207 = vmatmul.bf16.gmra.mxu0 %v1038
    %v1208 = vpop.f32.mrf.mxu0
    %v1209 = vadd.f32 0.0, %v1208
    %v1210 = vpop.f32.mrf.mxu0
    %v1211 = vadd.f32 0.0, %v1210
    %1212 = vmatmul.bf16.gmra.mxu0 %v1039
    %v1213 = vpop.f32.mrf.mxu0
    %v1214 = vadd.f32 0.0, %v1213
    %v1215 = vpop.f32.mrf.mxu0
    %v1216 = vadd.f32 0.0, %v1215
    %1217 = vmatmul.bf16.gmra.mxu0 %v1040
    %v1218 = vpop.f32.mrf.mxu0
    %v1219 = vadd.f32 0.0, %v1218
    %v1220 = vpop.f32.mrf.mxu0
    %v1221 = vadd.f32 0.0, %v1220
    %1222 = vmatmul.bf16.gmra.mxu0 %v1041
    %v1223 = vpop.f32.mrf.mxu0
    %v1224 = vadd.f32 0.0, %v1223
    %v1225 = vpop.f32.mrf.mxu0
    %v1226 = vadd.f32 0.0, %v1225
    %1227 = vdwg.mxu0
    %v1228 = vpack.c.bf16 %v1191, %v1189
    %v1229 = vpack.c.bf16 %v1196, %v1194
    %v1230 = vpack.c.bf16 %v1201, %v1199
    %v1231 = vpack.c.bf16 %v1206, %v1204
    %v1232 = vpack.c.bf16 %v1211, %v1209
    %v1233 = vpack.c.bf16 %v1216, %v1214
    %v1234 = vpack.c.bf16 %v1221, %v1219
    %v1235 = vpack.c.bf16 %v1226, %v1224
    %1236 = vmatpush.bf16.msra.mxu0 %v1235
    %1237 = vmatpush.bf16.msra.mxu0 %v1234
    %1238 = vmatpush.bf16.msra.mxu0 %v1233
    %1239 = vmatpush.bf16.msra.mxu0 %v1232
    %1240 = vmatpush.bf16.msra.mxu0 %v1231
    %1241 = vmatpush.bf16.msra.mxu0 %v1230
    %1242 = vmatpush.bf16.msra.mxu0 %v1229
    %1243 = vmatpush.bf16.msra.mxu0 %v1228
    %1244 = vmatmul.bf16.gmra.mxu0 %v422
    %v1245 = vpop.f32.mrf.mxu0
    %v1246 = vadd.f32 0.0, %v1245
    %v1247 = vpop.f32.mrf.mxu0
    %v1248 = vadd.f32 0.0, %v1247
    %1249 = vmatmul.bf16.gmra.mxu0 %v423
    %v1250 = vpop.f32.mrf.mxu0
    %v1251 = vadd.f32 0.0, %v1250
    %v1252 = vpop.f32.mrf.mxu0
    %v1253 = vadd.f32 0.0, %v1252
    %1254 = vmatmul.bf16.gmra.mxu0 %v424
    %v1255 = vpop.f32.mrf.mxu0
    %v1256 = vadd.f32 0.0, %v1255
    %v1257 = vpop.f32.mrf.mxu0
    %v1258 = vadd.f32 0.0, %v1257
    %1259 = vmatmul.bf16.gmra.mxu0 %v425
    %v1260 = vpop.f32.mrf.mxu0
    %v1261 = vadd.f32 0.0, %v1260
    %v1262 = vpop.f32.mrf.mxu0
    %v1263 = vadd.f32 0.0, %v1262
    %1264 = vmatmul.bf16.gmra.mxu0 %v426
    %v1265 = vpop.f32.mrf.mxu0
    %v1266 = vadd.f32 0.0, %v1265
    %v1267 = vpop.f32.mrf.mxu0
    %v1268 = vadd.f32 0.0, %v1267
    %1269 = vmatmul.bf16.gmra.mxu0 %v427
    %v1270 = vpop.f32.mrf.mxu0
    %v1271 = vadd.f32 0.0, %v1270
    %v1272 = vpop.f32.mrf.mxu0
    %v1273 = vadd.f32 0.0, %v1272
    %1274 = vmatmul.bf16.gmra.mxu0 %v428
    %v1275 = vpop.f32.mrf.mxu0
    %v1276 = vadd.f32 0.0, %v1275
    %v1277 = vpop.f32.mrf.mxu0
    %v1278 = vadd.f32 0.0, %v1277
    %1279 = vmatmul.bf16.gmra.mxu0 %v429
    %v1280 = vpop.f32.mrf.mxu0
    %v1281 = vadd.f32 0.0, %v1280
    %v1282 = vpop.f32.mrf.mxu0
    %v1283 = vadd.f32 0.0, %v1282
    %1284 = vdwg.mxu0
    %v1285 = vadd.f32 %v1140, %v1246
    %v1286 = vadd.f32 %v1142, %v1248
    %v1287 = vadd.f32 %v1145, %v1251
    %v1288 = vadd.f32 %v1147, %v1253
    %v1289 = vadd.f32 %v1150, %v1256
    %v1290 = vadd.f32 %v1152, %v1258
    %v1291 = vadd.f32 %v1155, %v1261
    %v1292 = vadd.f32 %v1157, %v1263
    %v1293 = vadd.f32 %v1160, %v1266
    %v1294 = vadd.f32 %v1162, %v1268
    %v1295 = vadd.f32 %v1165, %v1271
    %v1296 = vadd.f32 %v1167, %v1273
    %v1297 = vadd.f32 %v1170, %v1276
    %v1298 = vadd.f32 %v1172, %v1278
    %v1299 = vadd.f32 %v1175, %v1281
    %v1300 = vadd.f32 %v1177, %v1283
    %v1301 = vld [vmem:[%s7] sm:$0x1]
    %v1303 = vperm.slane %v1301, 0
    %v1305 = vadd.f32 %v1285, %v1303
    %v1306 = vadd.f32 %v1286, %v1303
    %v1307 = vadd.f32 %v1287, %v1303
    %v1308 = vadd.f32 %v1288, %v1303
    %v1309 = vadd.f32 %v1289, %v1303
    %v1310 = vadd.f32 %v1290, %v1303
    %v1311 = vadd.f32 %v1291, %v1303
    %v1312 = vadd.f32 %v1292, %v1303
    %v1313 = vadd.f32 %v1293, %v1303
    %v1314 = vadd.f32 %v1294, %v1303
    %v1315 = vadd.f32 %v1295, %v1303
    %v1316 = vadd.f32 %v1296, %v1303
    %v1317 = vadd.f32 %v1297, %v1303
    %v1318 = vadd.f32 %v1298, %v1303
    %v1319 = vadd.f32 %v1299, %v1303
    %v1320 = vadd.f32 %v1300, %v1303
    %1321 = vst [vmem:[#allocation13] sm:$0xff] %v1305
    %1322 = vst [vmem:[#allocation13 + $0x8] sm:$0xff] %v1306
    %1323 = vst [vmem:[#allocation13 + $0x10] sm:$0xff] %v1307
    %1324 = vst [vmem:[#allocation13 + $0x18] sm:$0xff] %v1308
    %1325 = vst [vmem:[#allocation13 + $0x20] sm:$0xff] %v1309
    %1326 = vst [vmem:[#allocation13 + $0x28] sm:$0xff] %v1310
    %1327 = vst [vmem:[#allocation13 + $0x30] sm:$0xff] %v1311
    %1328 = vst [vmem:[#allocation13 + $0x38] sm:$0xff] %v1312
    %1329 = vst [vmem:[#allocation13 + $0x40] sm:$0xff] %v1313
    %1330 = vst [vmem:[#allocation13 + $0x48] sm:$0xff] %v1314
    %1331 = vst [vmem:[#allocation13 + $0x50] sm:$0xff] %v1315
    %1332 = vst [vmem:[#allocation13 + $0x58] sm:$0xff] %v1316
    %1333 = vst [vmem:[#allocation13 + $0x60] sm:$0xff] %v1317
    %1334 = vst [vmem:[#allocation13 + $0x68] sm:$0xff] %v1318
    %1335 = vst [vmem:[#allocation13 + $0x70] sm:$0xff] %v1319
    %1336 = vst [vmem:[#allocation13 + $0x78] sm:$0xff] %v1320
    // Predicated region
    $region54: #{tpu_custom_call.1} parent=1 // pred_check
      _
    $region55: #{tpu_custom_call.1} parent=1 // pred_check_branch
      %1338 = sbr.rel (0) target = $region57
    $region56: #{tpu_custom_call.1} parent=1 // pred_region
      %1340 = vsyncadd [#allocation6], 0
      %s1341 = sshll.u32 [#allocation13], 4
      %s1342 = int_to_ptr.vmem [resolvable:$true] %s1341
      %s1343 = sshll.u32 %s8, 4
      %s1344 = int_to_ptr.hbm [resolvable:$true] %s1343
      %1349 = dma.vmem_to_hbm [thread:$0]  %s1342, 2048, %s1344, [#allocation6], 128, 128, 8
    $region57: #{tpu_custom_call.1} parent=1 // pred_fallthru
      _
    // Predicated region
    $region58: #{tpu_custom_call.1} parent=1 // pred_check
      _
    $region59: #{tpu_custom_call.1} parent=1 // pred_check_branch
      %1351 = sbr.rel (0) target = $region61
    $region60: #{tpu_custom_call.1} parent=1 // pred_region
      %1353 = dma.done [#allocation6], 2048
    $region61: #{tpu_custom_call.1} parent=1 // pred_fallthru
      _
    %1354 = vsyncpa [#allocation5], 1
    %1355 = vsyncpa [#allocation8], 1
    %1356 = vsyncpa [#allocation11], 1
    %1357 = vsyncpa [#allocation6], 1

</llo_original>
